<compile_context>
chip_gen: v5e
topology: v5e:2x2
jax: 0.10.0
libtpu: 0.0.40
codegen_flags: <defaults>
</compile_context>

<pallas_src>
import functools

import jax
import jax.numpy as jnp
from jax.experimental import pallas as pl
from jax.experimental.pallas import tpu as pltpu


# Conservative defaults that work on v5e / v6e / v7x (v7x has only 64 MiB VMEM per TC).
_DEFAULT_VMEM_TILE_BUDGET_BYTES = 40 * 1024 * 1024   # budget for all pipelined tiles
_DEFAULT_VMEM_LIMIT_BYTES = 48 * 1024 * 1024          # scoped VMEM limit passed to Mosaic


def _ema_center_kernel(x_ref, c_ref, out_ref, newc_ref, sum_ref, *,
                       momentum: float, sum_coeff: float):
    # grid = (feature_blocks, batch_blocks); batch is the trailing ("arbitrary") axis.
    b = pl.program_id(1)

    x = x_ref[...]                  # (batch_tile, feat_tile)
    c = c_ref[...]                  # (1, feat_tile)

    # Elementwise hot path: subtract the center in the input dtype (no full-tile upcast).
    out_ref[...] = (x - c.astype(x.dtype)).astype(out_ref.dtype)

    # Reduction path: accumulate the per-feature batch sum in f32 (tiny (1, feat_tile)).
    @pl.when(b == 0)
    def _init():
        sum_ref[...] = jnp.zeros_like(sum_ref)

    sum_ref[...] += jnp.sum(x, axis=0, keepdims=True, dtype=jnp.float32)

    # Finalize the EMA update on the last batch step:
    #   new_center = center * momentum + (sum / B) * (1 - momentum)
    # sum_coeff == (1 - momentum) / B is a static Python constant (mean + scale fused).
    @pl.when(b == pl.num_programs(1) - 1)
    def _finalize():
        new_c = c.astype(jnp.float32) * momentum + sum_ref[...] * sum_coeff
        newc_ref[...] = new_c.astype(newc_ref.dtype)


def _choose_tiling(batch: int, features: int, itemsize: int,
                   vmem_tile_budget_bytes: int):
    """Pick (batch_tile, feat_tile): the biggest tiles whose pipelined VMEM fits."""

    def footprint(bt, ft):
        io = 2 * 2 * bt * ft * itemsize     # x in + centered out, double-buffered
        ctr = 2 * 2 * ft * 4                 # center in + new_center out (<= f32)
        scratch = ft * 4                     # f32 batch-sum accumulator
        return io + ctr + scratch

    # Feature-tile candidates, largest first: F itself (always layout-legal), then
    # lane-aligned (multiple-of-128) divisors of F.
    ft_candidates = [features] + [
        ft for ft in range((features // 128) * 128, 0, -128)
        if ft != features and features % ft == 0
    ]

    # Prefer no batch tiling (single pass over the batch => single-step reduction).
    fitting = [ft for ft in ft_candidates
               if footprint(batch, ft) <= vmem_tile_budget_bytes]
    if fitting:
        # Prefer >= 2 feature grid steps (lets v7x shard across its 2 TensorCores)
        # as long as the tiles stay lane-fat (>= 512 lanes => near-roofline streaming).
        multi = [ft for ft in fitting if features // ft >= 2 and ft >= 512]
        return batch, (multi[0] if multi else fitting[0])

    # Very large batch: tile the batch dimension too (sum accumulated across steps).
    ft = ft_candidates[-1]
    bt_candidates = [batch] + [
        bt for bt in range((batch // 8) * 8, 0, -8)
        if bt != batch and batch % bt == 0
    ]
    for bt in bt_candidates:
        if footprint(bt, ft) <= vmem_tile_budget_bytes:
            return bt, ft
    return bt_candidates[-1], ft   # best effort


def ema_center_forward(teacher_output: jax.Array,
                       center: jax.Array,
                       *,
                       momentum: float = 0.9,
                       feat_tile: int | None = None,
                       batch_tile: int | None = None,
                       vmem_tile_budget_bytes: int = _DEFAULT_VMEM_TILE_BUDGET_BYTES,
                       vmem_limit_bytes: int = _DEFAULT_VMEM_LIMIT_BYTES):
    """Returns (centered, new_center). `center` is donated (updated in place)."""
    B, F = teacher_output.shape
    assert center.shape == (1, F)

    if feat_tile is None or batch_tile is None:
        itemsize = jnp.dtype(teacher_output.dtype).itemsize
        bt_auto, ft_auto = _choose_tiling(B, F, itemsize, vmem_tile_budget_bytes)
        feat_tile = feat_tile if feat_tile is not None else ft_auto
        batch_tile = batch_tile if batch_tile is not None else bt_auto

    assert F % feat_tile == 0, "feature dim must be a multiple of feat_tile"
    assert B % batch_tile == 0, "batch dim must be a multiple of batch_tile"

    kernel = functools.partial(
        _ema_center_kernel,
        momentum=float(momentum),
        sum_coeff=(1.0 - float(momentum)) / B,
    )

    grid = (F // feat_tile, B // batch_tile)

    centered, new_center = pl.pallas_call(
        kernel,
        out_shape=(
            jax.ShapeDtypeStruct((B, F), teacher_output.dtype),
            jax.ShapeDtypeStruct((1, F), center.dtype),
        ),
        grid=grid,
        in_specs=[
            pl.BlockSpec((batch_tile, feat_tile), lambda j, b: (b, j)),
            pl.BlockSpec((1, feat_tile), lambda j, b: (0, j)),
        ],
        out_specs=(
            pl.BlockSpec((batch_tile, feat_tile), lambda j, b: (b, j)),
            pl.BlockSpec((1, feat_tile), lambda j, b: (0, j)),
        ),
        scratch_shapes=[pltpu.VMEM((1, feat_tile), jnp.float32)],
        # In-place EMA update of the center buffer (matches the PyTorch buffer semantics).
        input_output_aliases={1: 1},
        compiler_params=pltpu.CompilerParams(
            dimension_semantics=("parallel", "arbitrary"),
            vmem_limit_bytes=vmem_limit_bytes,
        ),
    )(teacher_output, center)

    return centered, new_center


def ema_center_reference(teacher_output, center, momentum=0.9):
    centered = teacher_output - center
    batch_center = jnp.mean(teacher_output, axis=0, keepdims=True)
    new_center = center * momentum + batch_center * (1.0 - momentum)
    return centered, new_center


if __name__ == "__main__":
    key = jax.random.PRNGKey(0)
    k1, k2 = jax.random.split(key)

    B, F = 8, 256            # small shapes consistent with (batch, in_features)
    momentum = 0.9

    teacher_output = jax.random.normal(k1, (B, F), dtype=jnp.float32)
    # Module initializes the buffer to zeros; use a nonzero (deterministic) center so
    # both the subtraction and the EMA path are meaningfully exercised.
    center = 0.1 * jax.random.normal(k2, (1, F), dtype=jnp.float32)

    # Compute the reference BEFORE the kernel call: `center` is donated (aliased) to
    # the updated-center output.
    ref_centered, ref_new_center = ema_center_reference(
        teacher_output, center, momentum=momentum)
    ref_centered = jax.block_until_ready(ref_centered)
    ref_new_center = jax.block_until_ready(ref_new_center)

    centered, new_center = ema_center_forward(
        teacher_output, center, momentum=momentum)
    centered = jax.block_until_ready(centered)
    new_center = jax.block_until_ready(new_center)

    assert jnp.allclose(centered, ref_centered, atol=1e-5, rtol=1e-5)
    assert jnp.allclose(new_center, ref_new_center, atol=1e-5, rtol=1e-5)

    print("KERNEL_OK")
</pallas_src>

<mosaic_0001>
module attributes {stable_mosaic.version = 11 : i64} {
  func.func @_ema_center_kernel(%arg0: i32, %arg1: i32, %arg2: memref<8x256xf32, #tpu.memory_space<vmem>>, %arg3: memref<1x256xf32, #tpu.memory_space<vmem>>, %arg4: memref<8x256xf32, #tpu.memory_space<vmem>>, %arg5: memref<1x256xf32, #tpu.memory_space<vmem>>, %arg6: memref<1x256xf32, #tpu.memory_space<vmem>>) attributes {dimension_semantics = [#tpu.dimension_semantics<parallel>, #tpu.dimension_semantics<arbitrary>], iteration_bounds = array<i64: 1, 1>, scalar_prefetch = 0 : i64, scratch_operands = 1 : i64, tpu.core_type = #tpu.core_type<tc>, window_params = [{transform_indices = @transform_0, window_bounds = array<i64: 8, 256>}, {transform_indices = @transform_1, window_bounds = array<i64: 1, 256>}, {transform_indices = @transform_2, window_bounds = array<i64: 8, 256>}, {transform_indices = @transform_3, window_bounds = array<i64: 1, 256>}]} {
    %c0 = arith.constant 0 : index
    %c0_0 = arith.constant 0 : index
    %0 = vector.load %arg2[%c0, %c0_0] : memref<8x256xf32, #tpu.memory_space<vmem>>, vector<8x256xf32>
    %c0_1 = arith.constant 0 : index
    %c0_2 = arith.constant 0 : index
    %1 = vector.load %arg3[%c0_1, %c0_2] : memref<1x256xf32, #tpu.memory_space<vmem>>, vector<1x256xf32>
    %2 = vector.broadcast %1 : vector<1x256xf32> to vector<8x256xf32>
    %3 = arith.subf %0, %2 : vector<8x256xf32>
    %c0_3 = arith.constant 0 : index
    %c0_4 = arith.constant 0 : index
    %4 = vector.load %arg4[%c0_3, %c0_4] : memref<8x256xf32, #tpu.memory_space<vmem>>, vector<8x256xf32>
    tpu.vector_store %arg4[%c0_3, %c0_4], %3 {strides = array<i32>} : memref<8x256xf32, #tpu.memory_space<vmem>>, vector<8x256xf32>,
    %c0_i32 = arith.constant 0 : i32
    %5 = arith.cmpi eq, %arg1, %c0_i32 : i32
    %6 = arith.extui %5 : i1 to i32
    %c0_i32_5 = arith.constant 0 : i32
    %7 = arith.cmpi ne, %6, %c0_i32_5 : i32
    scf.if %7 {
      %cst_12 = arith.constant 0.000000e+00 : f32
      %16 = vector.broadcast %cst_12 : f32 to vector<1x256xf32>
      %c0_13 = arith.constant 0 : index
      %c0_14 = arith.constant 0 : index
      %17 = vector.load %arg6[%c0_13, %c0_14] : memref<1x256xf32, #tpu.memory_space<vmem>>, vector<1x256xf32>
      tpu.vector_store %arg6[%c0_13, %c0_14], %16 {strides = array<i32>} : memref<1x256xf32, #tpu.memory_space<vmem>>, vector<1x256xf32>,
    } else {
    }
    %c0_6 = arith.constant 0 : index
    %c0_7 = arith.constant 0 : index
    %8 = vector.load %arg6[%c0_6, %c0_7] : memref<1x256xf32, #tpu.memory_space<vmem>>, vector<1x256xf32>
    %cst = arith.constant dense<0.000000e+00> : vector<256xf32>
    %9 = vector.multi_reduction <add>, %0, %cst [0] : vector<8x256xf32> to vector<256xf32>
    %10 = vector.shape_cast %9 : vector<256xf32> to vector<1x256xf32>
    %11 = arith.addf %8, %10 : vector<1x256xf32>
    %c0_8 = arith.constant 0 : index
    %c0_9 = arith.constant 0 : index
    %12 = vector.load %arg6[%c0_8, %c0_9] : memref<1x256xf32, #tpu.memory_space<vmem>>, vector<1x256xf32>
    tpu.vector_store %arg6[%c0_8, %c0_9], %11 {strides = array<i32>} : memref<1x256xf32, #tpu.memory_space<vmem>>, vector<1x256xf32>,
    %c0_i32_10 = arith.constant 0 : i32
    %13 = arith.cmpi eq, %arg1, %c0_i32_10 : i32
    %14 = arith.extui %13 : i1 to i32
    %c0_i32_11 = arith.constant 0 : i32
    %15 = arith.cmpi ne, %14, %c0_i32_11 : i32
    scf.if %15 {
      %cst_12 = arith.constant 0.899999976 : f32
      %16 = vector.broadcast %cst_12 : f32 to vector<1x256xf32>
      %17 = arith.mulf %1, %16 : vector<1x256xf32>
      %c0_13 = arith.constant 0 : index
      %c0_14 = arith.constant 0 : index
      %18 = vector.load %arg6[%c0_13, %c0_14] : memref<1x256xf32, #tpu.memory_space<vmem>>, vector<1x256xf32>
      %cst_15 = arith.constant 1.250000e-02 : f32
      %19 = vector.broadcast %cst_15 : f32 to vector<1x256xf32>
      %20 = arith.mulf %18, %19 : vector<1x256xf32>
      %21 = arith.addf %17, %20 : vector<1x256xf32>
      %c0_16 = arith.constant 0 : index
      %c0_17 = arith.constant 0 : index
      %22 = vector.load %arg5[%c0_16, %c0_17] : memref<1x256xf32, #tpu.memory_space<vmem>>, vector<1x256xf32>
      tpu.vector_store %arg5[%c0_16, %c0_17], %21 {strides = array<i32>} : memref<1x256xf32, #tpu.memory_space<vmem>>, vector<1x256xf32>,
    } else {
    }
    return
  }
  func.func @transform_0(%arg0: i32, %arg1: i32) -> (i32, i32) {
    %c0_i32 = arith.constant 0 : i32
    return %arg1, %arg0 : i32, i32
  }
  func.func @transform_1(%arg0: i32, %arg1: i32) -> (i32, i32) {
    %c0_i32 = arith.constant 0 : i32
    %c0_i32_0 = arith.constant 0 : i32
    return %c0_i32, %arg0 : i32, i32
  }
  func.func @transform_2(%arg0: i32, %arg1: i32) -> (i32, i32) {
    %c0_i32 = arith.constant 0 : i32
    return %arg1, %arg0 : i32, i32
  }
  func.func @transform_3(%arg0: i32, %arg1: i32) -> (i32, i32) {
    %c0_i32 = arith.constant 0 : i32
    %c0_i32_0 = arith.constant 0 : i32
    return %c0_i32, %arg0 : i32, i32
  }
}

</mosaic_0001>

<llo_original>
// kernel: tpu_custom_call.1
$region0: #{tpu_custom_call.1}
  #allocation0 [shape = 'u32[]', space=smem, size = 0x4, offset = 0x4, fixed_abs, tag = 'smem constant byte address 0x4 - core index']
  #allocation1 [shape = 'u32[72,128]{1,0:T(1,128)}', space=vmem, size = 0x9000, scoped, tag = 'internal scratch']
  #allocation2 [shape = 'f32[1,256]{1,0:T(1,128)}', space=vmem, size = 0x400, scoped, tag = 'scratch operand']
  %s0 = inlined_call_operand.hbm [shape: f32[8,256], index: 0, kind: input, shape index: {}]
  %s1 = inlined_call_operand.hbm [shape: f32[1,256], index: 1, kind: input, shape index: {}, may-alias: {1,3}]
  %s2 = inlined_call_operand.hbm [shape: f32[8,256], index: 2, kind: output, shape index: {0}]
  %s3 = inlined_call_operand.hbm [shape: f32[1,256], index: 3, kind: output, shape index: {1}, may-alias: {1,3}]
  %4 = xla_tuple %s2, %s3
  %s5 = sld [smem:[#allocation0]]
  $region42: #{tpu_custom_call.1} parent=0
    _
  %s7 = ssub.s32 1, %s5
  %s8 = scalar_select 0, %s7, %s5
  $region1: #{tpu_custom_call.1} parent=0
    #allocation3 [shape = 'u8[8192]{0}', space=vmem, size = 0x2000, scoped, tag = 'input window, operand 0, single buffered']
    #allocation4 [shape = 's32[1]{0}', space=sflag, size = 0x4, scoped, tag = 'scoped memory for tpu_custom_call.1']
    #allocation5 [shape = 's32[1]{0}', space=sflag, size = 0x4, scoped, tag = 'scoped memory for tpu_custom_call.1']
    #allocation6 [shape = 'u8[1024]{0}', space=vmem, size = 0x400, scoped, tag = 'input window, operand 1, single buffered']
    #allocation7 [shape = 's32[1]{0}', space=sflag, size = 0x4, scoped, tag = 'scoped memory for tpu_custom_call.1']
    #allocation8 [shape = 'u8[8192]{0}', space=vmem, size = 0x2000, scoped, tag = 'output window, operand 0, single buffered']
    #allocation9 [shape = 'u8[1024]{0}', space=vmem, size = 0x400, scoped, tag = 'output window, operand 1, single buffered']
    #allocation10 [shape = 's32[1]{0}', space=sflag, size = 0x4, scoped, tag = 'scoped memory for tpu_custom_call.1']
    %9 = vsyncpa [#allocation4], 0
    %10 = vsyncpa [#allocation7], 0
    %11 = vsyncpa [#allocation5], 0
    %12 = vsyncpa [#allocation10], 0
    // Predicated region
    $region2: #{tpu_custom_call.1} parent=1 // pred_check
      _
    $region3: #{tpu_custom_call.1} parent=1 // pred_check_branch
      %14 = sbr.rel (0) target = $region5
    $region4: #{tpu_custom_call.1} parent=1 // pred_region
      %16 = vsyncadd [#allocation4], 0
      %s18 = sshll.u32 %s0, 4
      %s19 = int_to_ptr.hbm [resolvable:$true] %s18
      %s20 = sshll.u32 [#allocation3], 4
      %s21 = int_to_ptr.vmem [resolvable:$true] %s20
      %23 = dma.hbm_to_vmem [thread:$0]  %s19, 256, %s21, [#allocation4]
    $region5: #{tpu_custom_call.1} parent=1 // pred_fallthru
      _
    // Predicated region
    $region6: #{tpu_custom_call.1} parent=1 // pred_check
      _
    $region7: #{tpu_custom_call.1} parent=1 // pred_check_branch
      %25 = sbr.rel (0) target = $region9
    $region8: #{tpu_custom_call.1} parent=1 // pred_region
      %27 = vsyncadd [#allocation7], 0
      %s29 = sshll.u32 %s1, 4
      %s30 = int_to_ptr.hbm [resolvable:$true] %s29
      %s31 = sshll.u32 [#allocation6], 4
      %s32 = int_to_ptr.vmem [resolvable:$true] %s31
      %34 = dma.hbm_to_vmem [thread:$0]  %s30, 32, %s32, [#allocation7]
    $region9: #{tpu_custom_call.1} parent=1 // pred_fallthru
      _
    // Predicated region
    $region10: #{tpu_custom_call.1} parent=1 // pred_check
      _
    $region11: #{tpu_custom_call.1} parent=1 // pred_check_branch
      %36 = sbr.rel (0) target = $region13
    $region12: #{tpu_custom_call.1} parent=1 // pred_region
      %38 = dma.done [#allocation4], 256
    $region13: #{tpu_custom_call.1} parent=1 // pred_fallthru
      _
    // Predicated region
    $region14: #{tpu_custom_call.1} parent=1 // pred_check
      _
    $region15: #{tpu_custom_call.1} parent=1 // pred_check_branch
      %40 = sbr.rel (0) target = $region17
    $region16: #{tpu_custom_call.1} parent=1 // pred_region
      %42 = dma.done [#allocation7], 32
    $region17: #{tpu_custom_call.1} parent=1 // pred_fallthru
      _
    %v43 = vld [vmem:[#allocation3] sm:$0xff]
    %v44 = vld [vmem:[#allocation3 + $0x8] sm:$0xff]
    %v45 = vld [vmem:[#allocation6] sm:$0x3]
    %v47 = vperm.slane %v45, 0
    %v48 = vperm.slane %v45, 1
    %v51 = vsub.f32 %v43, %v47
    %v52 = vsub.f32 %v44, %v48
    %53 = vst [vmem:[#allocation8] sm:$0xff] %v51
    %54 = vst [vmem:[#allocation8 + $0x8] sm:$0xff] %v52
    %p55 = scmp.eq.s32.totalorder 0, 0
    // Predicated region
    $region18: #{tpu_custom_call.1} parent=1 // pred_check
      %p56 = pneg %p55
    $region19: #{tpu_custom_call.1} parent=1 // pred_check_branch
      %58 = sbr.rel (%p56) target = $region21
    $region20: #{tpu_custom_call.1} parent=1 // pred_region
      %v59 = vlaneseq
      %vm60 = vcmp.ge.s32.totalorder %v59, 0
      %vm61 = vcmp.lt.s32.totalorder %v59, 256
      %vm62 = vmand %vm60, %vm61
      %63 = vst.msk [vmem:[#allocation2] sm:$0x3] %vm62, 0.0
    $region21: #{tpu_custom_call.1} parent=1 // pred_fallthru
      _
    %v64 = vld [vmem:[#allocation2] sm:$0x3]
    %v65 = vrot.slane %v43, 4
    %v66 = vadd.f32 %v43, %v65
    %v67 = vrot.slane %v66, 2
    %v68 = vadd.f32 %v66, %v67
    %v69 = vrot.slane %v68, 1
    %v70 = vadd.f32 %v68, %v69
    %v71 = vrot.slane %v44, 4
    %v72 = vadd.f32 %v44, %v71
    %v73 = vrot.slane %v72, 2
    %v74 = vadd.f32 %v72, %v73
    %v75 = vrot.slane %v74, 1
    %v76 = vadd.f32 %v74, %v75
    %v79 = vrot.slane %v76, 7
    %vm80 = vcmask 1040384
    %v81 = vsel %vm80, %v70, %v79
    %v83 = vadd.f32 %v64, %v81
    %v84 = vlaneseq
    %vm85 = vcmp.ge.s32.totalorder %v84, 0
    %vm86 = vcmp.lt.s32.totalorder %v84, 256
    %vm87 = vmand %vm85, %vm86
    %88 = vst.msk [vmem:[#allocation2] sm:$0x3] %vm87, %v83
    // Predicated region
    $region22: #{tpu_custom_call.1} parent=1 // pred_check
      %p89 = pneg %p55
    $region23: #{tpu_custom_call.1} parent=1 // pred_check_branch
      %91 = sbr.rel (%p89) target = $region25
    $region24: #{tpu_custom_call.1} parent=1 // pred_region
      %v92 = vmul.f32 %v45, 0.9
      %v93 = vld [vmem:[#allocation2] sm:$0x3]
      %v94 = vmul.f32 %v93, 0.0125
      %v95 = vadd.f32 %v92, %v94
      %96 = vst.msk [vmem:[#allocation9] sm:$0x3] %vm87, %v95
    $region25: #{tpu_custom_call.1} parent=1 // pred_fallthru
      _
    // Predicated region
    $region26: #{tpu_custom_call.1} parent=1 // pred_check
      _
    $region27: #{tpu_custom_call.1} parent=1 // pred_check_branch
      %98 = sbr.rel (0) target = $region29
    $region28: #{tpu_custom_call.1} parent=1 // pred_region
      %100 = vsyncadd [#allocation5], 0
      %s102 = sshll.u32 [#allocation8], 4
      %s103 = int_to_ptr.vmem [resolvable:$true] %s102
      %s104 = sshll.u32 %s2, 4
      %s105 = int_to_ptr.hbm [resolvable:$true] %s104
      %107 = dma.vmem_to_hbm [thread:$0]  %s103, 256, %s105, [#allocation5]
    $region29: #{tpu_custom_call.1} parent=1 // pred_fallthru
      _
    // Predicated region
    $region30: #{tpu_custom_call.1} parent=1 // pred_check
      _
    $region31: #{tpu_custom_call.1} parent=1 // pred_check_branch
      %109 = sbr.rel (0) target = $region33
    $region32: #{tpu_custom_call.1} parent=1 // pred_region
      %111 = vsyncadd [#allocation10], 0
      %s113 = sshll.u32 [#allocation9], 4
      %s114 = int_to_ptr.vmem [resolvable:$true] %s113
      %s115 = sshll.u32 %s3, 4
      %s116 = int_to_ptr.hbm [resolvable:$true] %s115
      %118 = dma.vmem_to_hbm [thread:$0]  %s114, 32, %s116, [#allocation10]
    $region33: #{tpu_custom_call.1} parent=1 // pred_fallthru
      _
    // Predicated region
    $region34: #{tpu_custom_call.1} parent=1 // pred_check
      _
    $region35: #{tpu_custom_call.1} parent=1 // pred_check_branch
      %120 = sbr.rel (0) target = $region37
    $region36: #{tpu_custom_call.1} parent=1 // pred_region
      %122 = dma.done [#allocation5], 256
    $region37: #{tpu_custom_call.1} parent=1 // pred_fallthru
      _
    // Predicated region
    $region38: #{tpu_custom_call.1} parent=1 // pred_check
      _
    $region39: #{tpu_custom_call.1} parent=1 // pred_check_branch
      %124 = sbr.rel (0) target = $region41
    $region40: #{tpu_custom_call.1} parent=1 // pred_region
      %126 = dma.done [#allocation10], 32
    $region41: #{tpu_custom_call.1} parent=1 // pred_fallthru
      _
    %127 = vsyncpa [#allocation4], 1
    %128 = vsyncpa [#allocation7], 1
    %129 = vsyncpa [#allocation5], 1
    %130 = vsyncpa [#allocation10], 1

</llo_original>
